<compile_context>
chip_gen: v5e
topology: v5e:2x2
jax: 0.10.0
libtpu: 0.0.40
codegen_flags: <defaults>
</compile_context>

<pallas_src>
import jax
import jax.numpy as jnp
from jax import lax
from jax.experimental import pallas as pl
from jax.experimental.pallas import tpu as pltpu


_LANE = 128
_SUBLANE_BF16 = 16


def _round_up(x, m):
    return ((x + m - 1) // m) * m


def _num_tensorcores():
    """Best-effort TensorCore count (2 on v7x/megacore chips, else 1)."""
    try:
        info = pltpu.get_tpu_info()
        for name in ("num_cores", "core_count", "num_tensorcores", "cores_per_chip"):
            v = getattr(info, name, None)
            if v:
                return max(1, min(int(v), 8))
    except Exception:
        pass
    try:
        v = getattr(jax.devices()[0], "num_cores", 1) or 1
        return max(1, min(int(v), 8))
    except Exception:
        return 1


def _vmem_capacity_bytes():
    """Best-effort physical VMEM per core; conservative default (v7x = 64 MiB)."""
    try:
        info = pltpu.get_tpu_info()
        v = getattr(info, "vmem_capacity_bytes", None)
        if v:
            return int(v)
    except Exception:
        pass
    return 64 << 20


def _vmem_estimate(tb, tm, D, Cp, stream_onehot):
    """Conservative VMEM byte estimate for the chosen tiles (double-buffered)."""
    Dl = max(D, _LANE)
    est = 0
    est += 2 * tb * Dl * 2                       # pre-normalized batch blocks (bf16)
    est += 2 * D * tm * 2                        # featT blocks (bf16)
    if stream_onehot:
        est += 2 * tm * Cp * 2                   # streamed one-hot blocks (bf16)
    else:
        est += 2 * tm * _LANE * 4                # lane-padded label blocks (i32)
        est += tm * Cp * 2                       # in-kernel one-hot temporary (bf16)
    est += 2 * tb * _LANE * 4                    # target blocks
    est += 2 * 8 * Cp * 4                        # cluster counts
    est += 2 * tb * _LANE * 4                    # output blocks
    est += tb * Cp * 4                           # sim accumulator scratch
    est += tb * tm * 4 + tb * tm * 2             # cosine block f32 + bf16 copy
    est += 4 * tb * Cp * 4                       # finalize temporaries
    return est


def _finalize_block(sim_acc, cnt_ref, tgt_ref, loss_ref, inv_temp, Cp):
    """Per-cluster mean -> masked softmax -> per-sample NLL (runs once per batch tile)."""
    nums = cnt_ref[...]                                        # (1, Cp)
    mask = (nums > 0).astype(jnp.float32)
    denom = mask * nums + (1.0 - mask)
    inv_denom = pl.reciprocal(denom) * inv_temp                # (1, Cp)
    sim = sim_acc[...] * inv_denom                             # (tb, Cp)

    # NOTE: no max-subtraction, to match the reference masked_softmax exactly.
    # Safe because inputs and memory features are unit-norm, so |sim| <= 1/temp.
    exps = jnp.exp(sim) * mask
    inv_sum = pl.reciprocal(jnp.sum(exps, axis=1, keepdims=True) + 1e-6)  # (tb, 1)
    logp = jnp.log(exps * inv_sum + 1e-6)

    iota_c = lax.broadcasted_iota(jnp.int32, (1, Cp), 1)
    tgt_onehot = (tgt_ref[...] == iota_c).astype(jnp.float32)  # (tb, Cp)
    loss_ref[...] = -jnp.sum(logp * tgt_onehot, axis=1, keepdims=True)


def _make_kernel_streamed(inv_temp, Cp):
    """Variant A: precomputed bf16 one-hot streamed from HBM (use when Cp <= D)."""
    def kernel(xn_ref, feat_ref, oh_ref, tgt_ref, cnt_ref, loss_ref, sim_acc):
        k = pl.program_id(1)

        @pl.when(k == 0)
        def _():
            sim_acc[...] = jnp.zeros_like(sim_acc)

        # cosine block: (tb, tm) = xn (tb, D) @ featT (D, tm); bf16 MXU, f32 acc.
        cos = jnp.dot(xn_ref[...], feat_ref[...], preferred_element_type=jnp.float32)
        # scatter-add over clusters as a bf16 one-hot matmul; cos in [-1, 1] so the
        # bf16 cast happens before the 1/temp scale (applied in the finalize).
        sim_acc[...] += jnp.dot(cos.astype(jnp.bfloat16), oh_ref[...],
                                preferred_element_type=jnp.float32)

        @pl.when(k == pl.num_programs(1) - 1)
        def _():
            _finalize_block(sim_acc, cnt_ref, tgt_ref, loss_ref, inv_temp, Cp)

    return kernel


def _make_kernel_labels(inv_temp, Cp):
    """Variant B: one-hot built in-kernel from labels (use when Cp > D)."""
    def kernel(xn_ref, feat_ref, lab_ref, tgt_ref, cnt_ref, loss_ref, sim_acc):
        k = pl.program_id(1)

        @pl.when(k == 0)
        def _():
            sim_acc[...] = jnp.zeros_like(sim_acc)

        cos = jnp.dot(xn_ref[...], feat_ref[...], preferred_element_type=jnp.float32)
        iota_c = lax.broadcasted_iota(jnp.int32, (1, Cp), 1)
        onehot = (lab_ref[...] == iota_c).astype(jnp.bfloat16)        # (tm, Cp)
        sim_acc[...] += jnp.dot(cos.astype(jnp.bfloat16), onehot,
                                preferred_element_type=jnp.float32)

        @pl.when(k == pl.num_programs(1) - 1)
        def _():
            _finalize_block(sim_acc, cnt_ref, tgt_ref, loss_ref, inv_temp, Cp)

    return kernel


def hybrid_memory_loss(results, indexes, features, labels, *, temp=0.05,
                       num_classes, tm=None, tb=None, stream_onehot=None):
    """Pallas TPU implementation of HybridMemory.forward (returns scalar loss)."""
    results = jnp.asarray(results, jnp.float32)
    features = jnp.asarray(features)
    labels = jnp.asarray(labels, jnp.int32)
    indexes = jnp.asarray(indexes, jnp.int32)

    B, D = results.shape
    M, D2 = features.shape
    assert D == D2, (D, D2)
    C = int(num_classes)                    # required statically (labels.max()+1 in the module)
    Cp = _round_up(max(C, 1), _LANE)        # lane-dense padded cluster axis

    if stream_onehot is None:
        # Stream a precomputed bf16 one-hot only when its HBM traffic stays below
        # the featT stream; otherwise build it in-kernel.
        stream_onehot = Cp <= D

    # TODO(synk): add the large-B fast path (W = features.T @ onehot in one XLA
    # matmul, then sim = xn @ W) when B > ~D*Cp/(D+Cp); streaming wins for
    # typical SpCL sizes so it is not implemented here.

    phys = _vmem_capacity_bytes()
    cap = max(32 << 20, min(int(phys * 0.75), phys - (16 << 20)))   # ~48 MiB v7x, ~96 MiB v5e/v6e
    n_cores = _num_tensorcores()

    # ---- batch tile: match the number of batch tiles to the TC count, cap at 256
    #      (256-wide v6e/v7x MXU); bf16 batch input -> 16-row alignment. ----
    if tb is None:
        Bp0 = _round_up(B, _SUBLANE_BF16)
        tb = _round_up(-(-Bp0 // max(1, n_cores)), _SUBLANE_BF16)
        tb = min(tb, 256)
    tb = max(_SUBLANE_BF16, _round_up(int(tb), _SUBLANE_BF16))
    Bp = _round_up(B, tb)
    nb = Bp // tb

    # ---- memory tile: sized against the scoped-VMEM cap, MXU-aligned. ----
    if tm is None:
        per_m = 4 * (D + (Cp if stream_onehot else 0))   # double-buffered bf16 bytes / column
        budget = max(4 << 20, cap // 2)
        tm = max(256, (budget // per_m // 256) * 256)
        tm = min(tm, 2048, _round_up(M, 256))
    tm = max(_LANE, _round_up(int(tm), _LANE))
    while tm > 256 and _vmem_estimate(tb, tm, D, Cp, stream_onehot) > int(0.85 * cap):
        tm -= 256
    Mp = _round_up(M, tm)
    nk = Mp // tm

    # ---- one-time JAX glue: normalize, gather targets, pad, pre-transpose, counts ----
    targets = labels[indexes]                                             # (B,)
    norm = jnp.maximum(jnp.linalg.norm(results, axis=1, keepdims=True), 1e-12)
    xn = jnp.zeros((Bp, D), jnp.bfloat16).at[:B].set((results / norm).astype(jnp.bfloat16))
    tgt = jnp.zeros((Bp, 1), jnp.int32).at[:B, 0].set(targets)
    featT = jnp.zeros((D, Mp), jnp.bfloat16).at[:, :M].set(features.astype(jnp.bfloat16).T)
    counts = jnp.zeros((Cp,), jnp.float32).at[labels].add(1.0).reshape(1, Cp)

    if stream_onehot:
        mem_arg = jnp.zeros((Mp, Cp), jnp.bfloat16).at[:M].set(
            jax.nn.one_hot(labels, Cp, dtype=jnp.bfloat16))              # padded rows -> zero
        mem_spec = pl.BlockSpec((tm, Cp), lambda i, k: (k, 0))
        kernel = _make_kernel_streamed(1.0 / float(temp), Cp)
    else:
        mem_arg = jnp.full((Mp, 1), Cp, jnp.int32).at[:M, 0].set(labels)  # sentinel -> zero one-hot row
        mem_spec = pl.BlockSpec((tm, 1), lambda i, k: (k, 0))
        kernel = _make_kernel_labels(1.0 / float(temp), Cp)

    est = _vmem_estimate(tb, tm, D, Cp, stream_onehot)
    vmem_limit = min(max(int(1.3 * est) + (4 << 20), 32 << 20), cap)

    per_sample = pl.pallas_call(
        kernel,
        out_shape=jax.ShapeDtypeStruct((Bp, 1), jnp.float32),
        grid_spec=pltpu.PrefetchScalarGridSpec(
            num_scalar_prefetch=0,
            grid=(nb, nk),                      # batch tiles (parallel) x memory blocks (reduction, last)
            in_specs=[
                pl.BlockSpec((tb, D), lambda i, k: (i, 0)),     # pre-normalized bf16 batch (resident over k)
                pl.BlockSpec((D, tm), lambda i, k: (0, k)),     # pre-transposed bf16 features
                mem_spec,                                       # streamed one-hot OR cluster labels
                pl.BlockSpec((tb, 1), lambda i, k: (i, 0)),     # per-sample targets (resident)
                pl.BlockSpec((1, Cp), lambda i, k: (0, 0)),     # precomputed cluster counts (resident)
            ],
            out_specs=pl.BlockSpec((tb, 1), lambda i, k: (i, 0)),
            scratch_shapes=[
                pltpu.VMEM((tb, Cp), jnp.float32),              # sim accumulator
            ],
        ),
        compiler_params=pltpu.CompilerParams(
            dimension_semantics=("parallel", "arbitrary"),
            vmem_limit_bytes=vmem_limit,
        ),
    )(xn, featT, mem_arg, tgt, counts)

    return jnp.mean(per_sample[:B, 0])


def hybrid_memory_loss_ref(results, indexes, features, labels, *, temp=0.05,
                           num_classes, emulate_kernel_dtypes=False):
    """Plain-JAX reference mirroring the PyTorch module (validation only)."""
    C = int(num_classes)
    x = results / jnp.maximum(jnp.linalg.norm(results, axis=1, keepdims=True), 1e-12)
    if emulate_kernel_dtypes:
        cos = jnp.dot(x.astype(jnp.bfloat16), features.astype(jnp.bfloat16).T,
                      preferred_element_type=jnp.float32)                    # (B, M)
        onehot = jax.nn.one_hot(labels, C, dtype=jnp.bfloat16)               # (M, C)
        sim = jnp.dot(cos.astype(jnp.bfloat16), onehot,
                      preferred_element_type=jnp.float32) / temp             # (B, C)
    else:
        cos = jnp.dot(x, features.T, preferred_element_type=jnp.float32)
        onehot = jax.nn.one_hot(labels, C, dtype=jnp.float32)
        sim = (cos @ onehot) / temp
    nums = jnp.sum(jax.nn.one_hot(labels, C, dtype=jnp.float32), axis=0, keepdims=True)
    mask = (nums > 0).astype(jnp.float32)
    sim = sim / (mask * nums + (1.0 - mask))
    exps = jnp.exp(sim) * mask
    probs = exps / (jnp.sum(exps, axis=1, keepdims=True) + 1e-6)
    logp = jnp.log(probs + 1e-6)
    targets = labels[indexes]
    return -jnp.mean(logp[jnp.arange(results.shape[0]), targets])


if __name__ == "__main__":
    key = jax.random.PRNGKey(0)

    def run_case(k, B, D, M, C, temp=0.05):
        k_x, k_f, k_i = jax.random.split(k, 3)
        results = jax.random.normal(k_x, (B, D), dtype=jnp.float32)
        # Memory buffer state (module fills it via _update_feature: L2-normalized rows).
        feats_raw = jax.random.normal(k_f, (M, D), dtype=jnp.float32)
        features = feats_raw / jnp.maximum(
            jnp.linalg.norm(feats_raw, axis=1, keepdims=True), 1e-12)
        labels = (jnp.arange(M) % C).astype(jnp.int32)
        indexes = jax.random.randint(k_i, (B,), 0, M, dtype=jnp.int32)

        loss = hybrid_memory_loss(results, indexes, features, labels,
                                  temp=temp, num_classes=C)
        loss = jax.block_until_ready(loss)

        # Tight check vs. a reference with the kernel's bf16 operand dtypes,
        # loose sanity check vs. the full-f32 reference.
        ref_emul = hybrid_memory_loss_ref(results, indexes, features, labels,
                                          temp=temp, num_classes=C,
                                          emulate_kernel_dtypes=True)
        ref_f32 = hybrid_memory_loss_ref(results, indexes, features, labels,
                                         temp=temp, num_classes=C)
        assert jnp.allclose(loss, ref_emul, atol=3e-3, rtol=3e-3), (loss, ref_emul)
        assert jnp.allclose(loss, ref_f32, atol=1.5e-1, rtol=1e-1), (loss, ref_f32)
        return float(loss)

    k1, k2 = jax.random.split(key)
    # In-kernel one-hot path (Cp > D): num_features=32, num_memory=64, B=8, C=8.
    run_case(k1, B=8, D=32, M=64, C=8)
    # Streamed one-hot path (Cp <= D): num_features=256, num_memory=96, B=16, C=16.
    run_case(k2, B=16, D=256, M=96, C=16)

    print("KERNEL_OK")
</pallas_src>

<mosaic_0001>
module attributes {stable_mosaic.version = 11 : i64} {
  func.func @kernel(%arg0: i32, %arg1: i32, %arg2: memref<16x32xbf16, #tpu.memory_space<vmem>>, %arg3: memref<32x256xbf16, #tpu.memory_space<vmem>>, %arg4: memref<256x1xi32, #tpu.memory_space<vmem>>, %arg5: memref<16x1xi32, #tpu.memory_space<vmem>>, %arg6: memref<1x128xf32, #tpu.memory_space<vmem>>, %arg7: memref<16x1xf32, #tpu.memory_space<vmem>>, %arg8: memref<16x128xf32, #tpu.memory_space<vmem>>) attributes {dimension_semantics = [#tpu.dimension_semantics<parallel>, #tpu.dimension_semantics<arbitrary>], iteration_bounds = array<i64: 1, 1>, scalar_prefetch = 0 : i64, scratch_operands = 1 : i64, tpu.core_type = #tpu.core_type<tc>, window_params = [{transform_indices = @transform_0, window_bounds = array<i64: 16, 32>}, {transform_indices = @transform_1, window_bounds = array<i64: 32, 256>}, {transform_indices = @transform_2, window_bounds = array<i64: 256, 1>}, {transform_indices = @transform_3, window_bounds = array<i64: 16, 1>}, {pipeline_mode = #tpu.pipeline_mode<synchronous>, transform_indices = @transform_4, window_bounds = array<i64: 1, 128>}, {transform_indices = @transform_5, window_bounds = array<i64: 16, 1>}]} {
    %c0_i32 = arith.constant 0 : i32
    %0 = arith.cmpi eq, %arg1, %c0_i32 : i32
    %1 = arith.extui %0 : i1 to i32
    %c0_i32_0 = arith.constant 0 : i32
    %2 = arith.cmpi ne, %1, %c0_i32_0 : i32
    scf.if %2 {
      %cst_13 = arith.constant 0.000000e+00 : f32
      %22 = vector.broadcast %cst_13 : f32 to vector<16x128xf32>
      %c0_14 = arith.constant 0 : index
      %c0_15 = arith.constant 0 : index
      %23 = vector.load %arg8[%c0_14, %c0_15] : memref<16x128xf32, #tpu.memory_space<vmem>>, vector<16x128xf32>
      tpu.vector_store %arg8[%c0_14, %c0_15], %22 {strides = array<i32>} : memref<16x128xf32, #tpu.memory_space<vmem>>, vector<16x128xf32>,
    } else {
    }
    %c0 = arith.constant 0 : index
    %c0_1 = arith.constant 0 : index
    %3 = vector.load %arg2[%c0, %c0_1] : memref<16x32xbf16, #tpu.memory_space<vmem>>, vector<16x32xbf16>
    %c0_2 = arith.constant 0 : index
    %c0_3 = arith.constant 0 : index
    %4 = vector.load %arg3[%c0_2, %c0_3] : memref<32x256xbf16, #tpu.memory_space<vmem>>, vector<32x256xbf16>
    %cst = arith.constant dense<0.000000e+00> : vector<16x256xf32>
    %5 = tpu.matmul %3, %4, %cst {dimension_numbers = #tpu.dot_dimension_numbers<[1], [0], [0], [1], [0, 0, 1, 1], [], []>} : vector<16x32xbf16>, vector<32x256xbf16>, vector<16x256xf32> -> vector<16x256xf32>
    %6 = tpu.iota {dimensions = array<i32: 1>} : vector<1x128xi32>
    %c0_4 = arith.constant 0 : index
    %c0_5 = arith.constant 0 : index
    %7 = vector.load %arg4[%c0_4, %c0_5] : memref<256x1xi32, #tpu.memory_space<vmem>>, vector<256x1xi32>
    %8 = vector.broadcast %7 : vector<256x1xi32> to vector<256x128xi32>
    %9 = vector.broadcast %6 : vector<1x128xi32> to vector<256x128xi32>
    %10 = arith.cmpi eq, %8, %9 : vector<256x128xi32>
    %11 = arith.extui %10 : vector<256x128xi1> to vector<256x128xi32>
    %12 = arith.sitofp %11 : vector<256x128xi32> to vector<256x128xf32>
    %13 = arith.truncf %12 : vector<256x128xf32> to vector<256x128xbf16>
    %c0_6 = arith.constant 0 : index
    %c0_7 = arith.constant 0 : index
    %14 = vector.load %arg8[%c0_6, %c0_7] : memref<16x128xf32, #tpu.memory_space<vmem>>, vector<16x128xf32>
    %15 = arith.truncf %5 : vector<16x256xf32> to vector<16x256xbf16>
    %cst_8 = arith.constant dense<0.000000e+00> : vector<16x128xf32>
    %16 = tpu.matmul %15, %13, %cst_8 {dimension_numbers = #tpu.dot_dimension_numbers<[1], [0], [0], [1], [0, 0, 1, 1], [], []>} : vector<16x256xbf16>, vector<256x128xbf16>, vector<16x128xf32> -> vector<16x128xf32>
    %17 = arith.addf %14, %16 : vector<16x128xf32>
    %c0_9 = arith.constant 0 : index
    %c0_10 = arith.constant 0 : index
    %18 = vector.load %arg8[%c0_9, %c0_10] : memref<16x128xf32, #tpu.memory_space<vmem>>, vector<16x128xf32>
    tpu.vector_store %arg8[%c0_9, %c0_10], %17 {strides = array<i32>} : memref<16x128xf32, #tpu.memory_space<vmem>>, vector<16x128xf32>,
    %c0_i32_11 = arith.constant 0 : i32
    %19 = arith.cmpi eq, %arg1, %c0_i32_11 : i32
    %20 = arith.extui %19 : i1 to i32
    %c0_i32_12 = arith.constant 0 : i32
    %21 = arith.cmpi ne, %20, %c0_i32_12 : i32
    scf.if %21 {
      %c0_13 = arith.constant 0 : index
      %c0_14 = arith.constant 0 : index
      %22 = vector.load %arg6[%c0_13, %c0_14] : memref<1x128xf32, #tpu.memory_space<vmem>>, vector<1x128xf32>
      %cst_15 = arith.constant 0.000000e+00 : f32
      %23 = vector.broadcast %cst_15 : f32 to vector<1x128xf32>
      %24 = arith.cmpf ogt, %22, %23 : vector<1x128xf32>
      %25 = arith.extui %24 : vector<1x128xi1> to vector<1x128xi32>
      %26 = arith.sitofp %25 : vector<1x128xi32> to vector<1x128xf32>
      %27 = arith.mulf %26, %22 : vector<1x128xf32>
      %cst_16 = arith.constant 1.000000e+00 : f32
      %28 = vector.broadcast %cst_16 : f32 to vector<1x128xf32>
      %29 = arith.subf %28, %26 : vector<1x128xf32>
      %30 = arith.addf %27, %29 : vector<1x128xf32>
      %31 = tpu.reciprocal %30 : vector<1x128xf32> -> vector<1x128xf32>
      %cst_17 = arith.constant 2.000000e+01 : f32
      %32 = vector.broadcast %cst_17 : f32 to vector<1x128xf32>
      %33 = arith.mulf %31, %32 : vector<1x128xf32>
      %c0_18 = arith.constant 0 : index
      %c0_19 = arith.constant 0 : index
      %34 = vector.load %arg8[%c0_18, %c0_19] : memref<16x128xf32, #tpu.memory_space<vmem>>, vector<16x128xf32>
      %35 = vector.broadcast %33 : vector<1x128xf32> to vector<16x128xf32>
      %36 = arith.mulf %34, %35 : vector<16x128xf32>
      %37 = math.exp %36 : vector<16x128xf32>
      %38 = vector.broadcast %26 : vector<1x128xf32> to vector<16x128xf32>
      %39 = arith.mulf %37, %38 : vector<16x128xf32>
      %cst_20 = arith.constant dense<0.000000e+00> : vector<16xf32>
      %40 = vector.multi_reduction <add>, %39, %cst_20 [1] : vector<16x128xf32> to vector<16xf32>
      %41 = vector.shape_cast %40 : vector<16xf32> to vector<16x1xf32>
      %cst_21 = arith.constant 9.99999997E-7 : f32
      %42 = vector.broadcast %cst_21 : f32 to vector<16x1xf32>
      %43 = arith.addf %41, %42 : vector<16x1xf32>
      %44 = tpu.reciprocal %43 : vector<16x1xf32> -> vector<16x1xf32>
      %45 = vector.broadcast %44 : vector<16x1xf32> to vector<16x128xf32>
      %46 = arith.mulf %39, %45 : vector<16x128xf32>
      %cst_22 = arith.constant 9.99999997E-7 : f32
      %47 = vector.broadcast %cst_22 : f32 to vector<16x128xf32>
      %48 = arith.addf %46, %47 : vector<16x128xf32>
      %49 = math.log %48 : vector<16x128xf32>
      %50 = tpu.iota {dimensions = array<i32: 1>} : vector<1x128xi32>
      %c0_23 = arith.constant 0 : index
      %c0_24 = arith.constant 0 : index
      %51 = vector.load %arg5[%c0_23, %c0_24] : memref<16x1xi32, #tpu.memory_space<vmem>>, vector<16x1xi32>
      %52 = vector.broadcast %51 : vector<16x1xi32> to vector<16x128xi32>
      %53 = vector.broadcast %50 : vector<1x128xi32> to vector<16x128xi32>
      %54 = arith.cmpi eq, %52, %53 : vector<16x128xi32>
      %55 = arith.extui %54 : vector<16x128xi1> to vector<16x128xi32>
      %56 = arith.sitofp %55 : vector<16x128xi32> to vector<16x128xf32>
      %57 = arith.mulf %49, %56 : vector<16x128xf32>
      %cst_25 = arith.constant dense<0.000000e+00> : vector<16xf32>
      %58 = vector.multi_reduction <add>, %57, %cst_25 [1] : vector<16x128xf32> to vector<16xf32>
      %59 = vector.shape_cast %58 : vector<16xf32> to vector<16x1xf32>
      %cst_26 = arith.constant 0.000000e+00 : f32
      %60 = vector.broadcast %cst_26 : f32 to vector<16x1xf32>
      %61 = arith.subf %60, %59 : vector<16x1xf32>
      %c0_27 = arith.constant 0 : index
      %c0_28 = arith.constant 0 : index
      %62 = vector.load %arg7[%c0_27, %c0_28] : memref<16x1xf32, #tpu.memory_space<vmem>>, vector<16x1xf32>
      tpu.vector_store %arg7[%c0_27, %c0_28], %61 {strides = array<i32>} : memref<16x1xf32, #tpu.memory_space<vmem>>, vector<16x1xf32>,
    } else {
    }
    return
  }
  func.func @transform_0(%arg0: i32, %arg1: i32) -> (i32, i32) {
    %c0_i32 = arith.constant 0 : i32
    %c0_i32_0 = arith.constant 0 : i32
    return %arg0, %c0_i32 : i32, i32
  }
  func.func @transform_1(%arg0: i32, %arg1: i32) -> (i32, i32) {
    %c0_i32 = arith.constant 0 : i32
    %c0_i32_0 = arith.constant 0 : i32
    return %c0_i32, %arg1 : i32, i32
  }
  func.func @transform_2(%arg0: i32, %arg1: i32) -> (i32, i32) {
    %c0_i32 = arith.constant 0 : i32
    %c0_i32_0 = arith.constant 0 : i32
    return %arg1, %c0_i32 : i32, i32
  }
  func.func @transform_3(%arg0: i32, %arg1: i32) -> (i32, i32) {
    %c0_i32 = arith.constant 0 : i32
    %c0_i32_0 = arith.constant 0 : i32
    return %arg0, %c0_i32 : i32, i32
  }
  func.func @transform_4(%arg0: i32, %arg1: i32) -> (i32, i32) {
    %c0_i32 = arith.constant 0 : i32
    %c0_i32_0 = arith.constant 0 : i32
    %c0_i32_1 = arith.constant 0 : i32
    return %c0_i32, %c0_i32_0 : i32, i32
  }
  func.func @transform_5(%arg0: i32, %arg1: i32) -> (i32, i32) {
    %c0_i32 = arith.constant 0 : i32
    %c0_i32_0 = arith.constant 0 : i32
    return %arg0, %c0_i32 : i32, i32
  }
}

</mosaic_0001>

<llo_original>
// kernel: tpu_custom_call.1
$region0: #{tpu_custom_call.1}
  #allocation0 [shape = 'u32[]', space=smem, size = 0x4, offset = 0x4, fixed_abs, tag = 'smem constant byte address 0x4 - core index']
  #allocation1 [shape = 'u32[72,128]{1,0:T(1,128)}', space=vmem, size = 0x9000, scoped, tag = 'internal scratch']
  #allocation2 [shape = 'f32[16,128]{1,0:T(8,128)}', space=vmem, size = 0x2000, scoped, tag = 'scratch operand']
  %s0 = inlined_call_operand.vmem [shape: bf16[16,32], index: 0, kind: input, shape index: {}]
  %s1 = inlined_call_operand.vmem [shape: bf16[32,256], index: 1, kind: input, shape index: {}]
  %s2 = inlined_call_operand.vmem [shape: s32[256,1], index: 2, kind: input, shape index: {}]
  %s3 = inlined_call_operand.vmem [shape: s32[16,1], index: 3, kind: input, shape index: {}]
  %s4 = inlined_call_operand.vmem [shape: f32[1,128], index: 4, kind: input, shape index: {}]
  %s5 = inlined_call_operand.vmem [shape: f32[16,1], index: 5, kind: output, shape index: {}]
  %s6 = sld [smem:[#allocation0]]
  $region38: #{tpu_custom_call.1} parent=0
    _
  %s8 = ssub.s32 1, %s6
  %s9 = scalar_select 0, %s8, %s6
  // Predicated region
  $region2: #{tpu_custom_call.1} parent=0 // pred_check
    _
  $region3: #{tpu_custom_call.1} parent=0 // pred_check_branch
    %11 = sbr.rel (0) target = $region5
  $region4: #{tpu_custom_call.1} parent=0 // pred_region
    _
  $region5: #{tpu_custom_call.1} parent=0 // pred_fallthru
    _
  // Predicated region
  $region6: #{tpu_custom_call.1} parent=0 // pred_check
    _
  $region7: #{tpu_custom_call.1} parent=0 // pred_check_branch
    %13 = sbr.rel (0) target = $region9
  $region8: #{tpu_custom_call.1} parent=0 // pred_region
    _
  $region9: #{tpu_custom_call.1} parent=0 // pred_fallthru
    _
  // Predicated region
  $region10: #{tpu_custom_call.1} parent=0 // pred_check
    _
  $region11: #{tpu_custom_call.1} parent=0 // pred_check_branch
    %15 = sbr.rel (0) target = $region13
  $region12: #{tpu_custom_call.1} parent=0 // pred_region
    _
  $region13: #{tpu_custom_call.1} parent=0 // pred_fallthru
    _
  // Predicated region
  $region14: #{tpu_custom_call.1} parent=0 // pred_check
    _
  $region15: #{tpu_custom_call.1} parent=0 // pred_check_branch
    %17 = sbr.rel (0) target = $region17
  $region16: #{tpu_custom_call.1} parent=0 // pred_region
    _
  $region17: #{tpu_custom_call.1} parent=0 // pred_fallthru
    _
  // Predicated region
  $region18: #{tpu_custom_call.1} parent=0 // pred_check
    _
  $region19: #{tpu_custom_call.1} parent=0 // pred_check_branch
    %19 = sbr.rel (0) target = $region21
  $region20: #{tpu_custom_call.1} parent=0 // pred_region
    _
  $region21: #{tpu_custom_call.1} parent=0 // pred_fallthru
    _
  %p21 = scmp.eq.s32.totalorder 0, 0
  // Predicated region
  $region22: #{tpu_custom_call.1} parent=0 // pred_check
    %p22 = pneg %p21
  $region23: #{tpu_custom_call.1} parent=0 // pred_check_branch
    %24 = sbr.rel (%p22) target = $region25
  $region24: #{tpu_custom_call.1} parent=0 // pred_region
    %25 = vst [vmem:[#allocation2] sm:$0xff] 0.0
    %26 = vst [vmem:[#allocation2 + $0x8] sm:$0xff] 0.0
  $region25: #{tpu_custom_call.1} parent=0 // pred_fallthru
    _
  %v27 = vld [vmem:[%s0] sm:$0xf]
  %v28 = vld [vmem:[%s0 + $0x4] sm:$0xf]
  %v29 = vld [vmem:[%s1] sm:$0xff]
  %v30 = vld [vmem:[%s1 + $0x8] sm:$0xff]
  %v31 = vld [vmem:[%s1 + $0x10] sm:$0xff]
  %v32 = vld [vmem:[%s1 + $0x18] sm:$0xff]
  %v35 = vunpack.c.l.b16 %v27
  %v36 = vunpack.c.l.b16 %v28
  %v37 = vpack.c.b16 %v36, %v35
  %v42 = vunpack.c.l.b16 %v29
  %v43 = vunpack.c.h.b16 %v29
  %v44 = vunpack.c.l.b16 %v30
  %v45 = vunpack.c.h.b16 %v30
  %v46 = vunpack.c.l.b16 %v31
  %v47 = vunpack.c.h.b16 %v31
  %v48 = vunpack.c.l.b16 %v32
  %v49 = vunpack.c.h.b16 %v32
  %v50 = vpack.c.b16 %v44, %v42
  %v51 = vpack.c.b16 %v45, %v43
  %v52 = vpack.c.b16 %v48, %v46
  %v53 = vpack.c.b16 %v49, %v47
  %vm58 = vcmask 261120
  %v60 = vsel %vm58, %v37, 0
  %62 = vmatpush.bf16.msra.mxu0 0
  %63 = vmatpush.bf16.msra.mxu0 0
  %64 = vmatpush.bf16.msra.mxu0 0
  %65 = vmatpush.bf16.msra.mxu0 0
  %66 = vmatpush.bf16.msra.mxu0 0
  %67 = vmatpush.bf16.msra.mxu0 0
  %68 = vmatpush.bf16.msra.mxu0 %v52
  %69 = vmatpush.bf16.msra.mxu0 %v50
  %70 = vmatmul.bf16.gmra.mxu0 %v60
  %v71 = vpop.f32.mrf.mxu0
  %v72 = vadd.f32 0.0, %v71
  %v73 = vpop.f32.mrf.mxu0
  %v74 = vadd.f32 0.0, %v73
  %75 = vdwg.mxu0
  %76 = vmatpush.bf16.msra.mxu0 0
  %77 = vmatpush.bf16.msra.mxu0 0
  %78 = vmatpush.bf16.msra.mxu0 0
  %79 = vmatpush.bf16.msra.mxu0 0
  %80 = vmatpush.bf16.msra.mxu0 0
  %81 = vmatpush.bf16.msra.mxu0 0
  %82 = vmatpush.bf16.msra.mxu0 %v53
  %83 = vmatpush.bf16.msra.mxu0 %v51
  %84 = vmatmul.bf16.gmra.mxu0 %v60
  %v85 = vpop.f32.mrf.mxu0
  %v86 = vadd.f32 0.0, %v85
  %v87 = vpop.f32.mrf.mxu0
  %v88 = vadd.f32 0.0, %v87
  %89 = vdwg.mxu0
  %v90 = vlaneseq
  %v91 = vand.u32 %v90, 127
  %v92 = vld [vmem:[%s2] sm:$0xff]
  %v93 = vld [vmem:[%s2 + $0x8] sm:$0xff]
  %v94 = vld [vmem:[%s2 + $0x10] sm:$0xff]
  %v95 = vld [vmem:[%s2 + $0x18] sm:$0xff]
  %v96 = vld [vmem:[%s2 + $0x20] sm:$0xff]
  %v97 = vld [vmem:[%s2 + $0x28] sm:$0xff]
  %v98 = vld [vmem:[%s2 + $0x30] sm:$0xff]
  %v99 = vld [vmem:[%s2 + $0x38] sm:$0xff]
  %v100 = vld [vmem:[%s2 + $0x40] sm:$0xff]
  %v101 = vld [vmem:[%s2 + $0x48] sm:$0xff]
  %v102 = vld [vmem:[%s2 + $0x50] sm:$0xff]
  %v103 = vld [vmem:[%s2 + $0x58] sm:$0xff]
  %v104 = vld [vmem:[%s2 + $0x60] sm:$0xff]
  %v105 = vld [vmem:[%s2 + $0x68] sm:$0xff]
  %v106 = vld [vmem:[%s2 + $0x70] sm:$0xff]
  %v107 = vld [vmem:[%s2 + $0x78] sm:$0xff]
  %v108 = vld [vmem:[%s2 + $0x80] sm:$0xff]
  %v109 = vld [vmem:[%s2 + $0x88] sm:$0xff]
  %v110 = vld [vmem:[%s2 + $0x90] sm:$0xff]
  %v111 = vld [vmem:[%s2 + $0x98] sm:$0xff]
  %v112 = vld [vmem:[%s2 + $0xa0] sm:$0xff]
  %v113 = vld [vmem:[%s2 + $0xa8] sm:$0xff]
  %v114 = vld [vmem:[%s2 + $0xb0] sm:$0xff]
  %v115 = vld [vmem:[%s2 + $0xb8] sm:$0xff]
  %v116 = vld [vmem:[%s2 + $0xc0] sm:$0xff]
  %v117 = vld [vmem:[%s2 + $0xc8] sm:$0xff]
  %v118 = vld [vmem:[%s2 + $0xd0] sm:$0xff]
  %v119 = vld [vmem:[%s2 + $0xd8] sm:$0xff]
  %v120 = vld [vmem:[%s2 + $0xe0] sm:$0xff]
  %v121 = vld [vmem:[%s2 + $0xe8] sm:$0xff]
  %v122 = vld [vmem:[%s2 + $0xf0] sm:$0xff]
  %v123 = vld [vmem:[%s2 + $0xf8] sm:$0xff]
  %124 = vset.pattern.permute.xlu0 0
  %125 = vperm.xlu0 %124, %v92
  %v126 = vpop.permute.xlu0 %125
  %127 = vset.pattern.permute.xlu0 0
  %128 = vperm.xlu0 %127, %v93
  %v129 = vpop.permute.xlu0 %128
  %130 = vset.pattern.permute.xlu0 0
  %131 = vperm.xlu0 %130, %v94
  %v132 = vpop.permute.xlu0 %131
  %133 = vset.pattern.permute.xlu0 0
  %134 = vperm.xlu0 %133, %v95
  %v135 = vpop.permute.xlu0 %134
  %136 = vset.pattern.permute.xlu0 0
  %137 = vperm.xlu0 %136, %v96
  %v138 = vpop.permute.xlu0 %137
  %139 = vset.pattern.permute.xlu0 0
  %140 = vperm.xlu0 %139, %v97
  %v141 = vpop.permute.xlu0 %140
  %142 = vset.pattern.permute.xlu0 0
  %143 = vperm.xlu0 %142, %v98
  %v144 = vpop.permute.xlu0 %143
  %145 = vset.pattern.permute.xlu0 0
  %146 = vperm.xlu0 %145, %v99
  %v147 = vpop.permute.xlu0 %146
  %148 = vset.pattern.permute.xlu0 0
  %149 = vperm.xlu0 %148, %v100
  %v150 = vpop.permute.xlu0 %149
  %151 = vset.pattern.permute.xlu0 0
  %152 = vperm.xlu0 %151, %v101
  %v153 = vpop.permute.xlu0 %152
  %154 = vset.pattern.permute.xlu0 0
  %155 = vperm.xlu0 %154, %v102
  %v156 = vpop.permute.xlu0 %155
  %157 = vset.pattern.permute.xlu0 0
  %158 = vperm.xlu0 %157, %v103
  %v159 = vpop.permute.xlu0 %158
  %160 = vset.pattern.permute.xlu0 0
  %161 = vperm.xlu0 %160, %v104
  %v162 = vpop.permute.xlu0 %161
  %163 = vset.pattern.permute.xlu0 0
  %164 = vperm.xlu0 %163, %v105
  %v165 = vpop.permute.xlu0 %164
  %166 = vset.pattern.permute.xlu0 0
  %167 = vperm.xlu0 %166, %v106
  %v168 = vpop.permute.xlu0 %167
  %169 = vset.pattern.permute.xlu0 0
  %170 = vperm.xlu0 %169, %v107
  %v171 = vpop.permute.xlu0 %170
  %172 = vset.pattern.permute.xlu0 0
  %173 = vperm.xlu0 %172, %v108
  %v174 = vpop.permute.xlu0 %173
  %175 = vset.pattern.permute.xlu0 0
  %176 = vperm.xlu0 %175, %v109
  %v177 = vpop.permute.xlu0 %176
  %178 = vset.pattern.permute.xlu0 0
  %179 = vperm.xlu0 %178, %v110
  %v180 = vpop.permute.xlu0 %179
  %181 = vset.pattern.permute.xlu0 0
  %182 = vperm.xlu0 %181, %v111
  %v183 = vpop.permute.xlu0 %182
  %184 = vset.pattern.permute.xlu0 0
  %185 = vperm.xlu0 %184, %v112
  %v186 = vpop.permute.xlu0 %185
  %187 = vset.pattern.permute.xlu0 0
  %188 = vperm.xlu0 %187, %v113
  %v189 = vpop.permute.xlu0 %188
  %190 = vset.pattern.permute.xlu0 0
  %191 = vperm.xlu0 %190, %v114
  %v192 = vpop.permute.xlu0 %191
  %193 = vset.pattern.permute.xlu0 0
  %194 = vperm.xlu0 %193, %v115
  %v195 = vpop.permute.xlu0 %194
  %196 = vset.pattern.permute.xlu0 0
  %197 = vperm.xlu0 %196, %v116
  %v198 = vpop.permute.xlu0 %197
  %199 = vset.pattern.permute.xlu0 0
  %200 = vperm.xlu0 %199, %v117
  %v201 = vpop.permute.xlu0 %200
  %202 = vset.pattern.permute.xlu0 0
  %203 = vperm.xlu0 %202, %v118
  %v204 = vpop.permute.xlu0 %203
  %205 = vset.pattern.permute.xlu0 0
  %206 = vperm.xlu0 %205, %v119
  %v207 = vpop.permute.xlu0 %206
  %208 = vset.pattern.permute.xlu0 0
  %209 = vperm.xlu0 %208, %v120
  %v210 = vpop.permute.xlu0 %209
  %211 = vset.pattern.permute.xlu0 0
  %212 = vperm.xlu0 %211, %v121
  %v213 = vpop.permute.xlu0 %212
  %214 = vset.pattern.permute.xlu0 0
  %215 = vperm.xlu0 %214, %v122
  %v216 = vpop.permute.xlu0 %215
  %217 = vset.pattern.permute.xlu0 0
  %218 = vperm.xlu0 %217, %v123
  %v219 = vpop.permute.xlu0 %218
  %vm220 = vcmp.eq.s32.totalorder %v126, %v91
  %vm221 = vcmp.eq.s32.totalorder %v129, %v91
  %vm222 = vcmp.eq.s32.totalorder %v132, %v91
  %vm223 = vcmp.eq.s32.totalorder %v135, %v91
  %vm224 = vcmp.eq.s32.totalorder %v138, %v91
  %vm225 = vcmp.eq.s32.totalorder %v141, %v91
  %vm226 = vcmp.eq.s32.totalorder %v144, %v91
  %vm227 = vcmp.eq.s32.totalorder %v147, %v91
  %vm228 = vcmp.eq.s32.totalorder %v150, %v91
  %vm229 = vcmp.eq.s32.totalorder %v153, %v91
  %vm230 = vcmp.eq.s32.totalorder %v156, %v91
  %vm231 = vcmp.eq.s32.totalorder %v159, %v91
  %vm232 = vcmp.eq.s32.totalorder %v162, %v91
  %vm233 = vcmp.eq.s32.totalorder %v165, %v91
  %vm234 = vcmp.eq.s32.totalorder %v168, %v91
  %vm235 = vcmp.eq.s32.totalorder %v171, %v91
  %vm236 = vcmp.eq.s32.totalorder %v174, %v91
  %vm237 = vcmp.eq.s32.totalorder %v177, %v91
  %vm238 = vcmp.eq.s32.totalorder %v180, %v91
  %vm239 = vcmp.eq.s32.totalorder %v183, %v91
  %vm240 = vcmp.eq.s32.totalorder %v186, %v91
  %vm241 = vcmp.eq.s32.totalorder %v189, %v91
  %vm242 = vcmp.eq.s32.totalorder %v192, %v91
  %vm243 = vcmp.eq.s32.totalorder %v195, %v91
  %vm244 = vcmp.eq.s32.totalorder %v198, %v91
  %vm245 = vcmp.eq.s32.totalorder %v201, %v91
  %vm246 = vcmp.eq.s32.totalorder %v204, %v91
  %vm247 = vcmp.eq.s32.totalorder %v207, %v91
  %vm248 = vcmp.eq.s32.totalorder %v210, %v91
  %vm249 = vcmp.eq.s32.totalorder %v213, %v91
  %vm250 = vcmp.eq.s32.totalorder %v216, %v91
  %vm251 = vcmp.eq.s32.totalorder %v219, %v91
  %v252 = vsel %vm220, 1, 0
  %v253 = vsel %vm221, 1, 0
  %v254 = vsel %vm222, 1, 0
  %v255 = vsel %vm223, 1, 0
  %v256 = vsel %vm224, 1, 0
  %v257 = vsel %vm225, 1, 0
  %v258 = vsel %vm226, 1, 0
  %v259 = vsel %vm227, 1, 0
  %v260 = vsel %vm228, 1, 0
  %v261 = vsel %vm229, 1, 0
  %v262 = vsel %vm230, 1, 0
  %v263 = vsel %vm231, 1, 0
  %v264 = vsel %vm232, 1, 0
  %v265 = vsel %vm233, 1, 0
  %v266 = vsel %vm234, 1, 0
  %v267 = vsel %vm235, 1, 0
  %v268 = vsel %vm236, 1, 0
  %v269 = vsel %vm237, 1, 0
  %v270 = vsel %vm238, 1, 0
  %v271 = vsel %vm239, 1, 0
  %v272 = vsel %vm240, 1, 0
  %v273 = vsel %vm241, 1, 0
  %v274 = vsel %vm242, 1, 0
  %v275 = vsel %vm243, 1, 0
  %v276 = vsel %vm244, 1, 0
  %v277 = vsel %vm245, 1, 0
  %v278 = vsel %vm246, 1, 0
  %v279 = vsel %vm247, 1, 0
  %v280 = vsel %vm248, 1, 0
  %v281 = vsel %vm249, 1, 0
  %v282 = vsel %vm250, 1, 0
  %v283 = vsel %vm251, 1, 0
  %v284 = vcvt.s32.f32 %v252
  %v285 = vcvt.s32.f32 %v253
  %v286 = vcvt.s32.f32 %v254
  %v287 = vcvt.s32.f32 %v255
  %v288 = vcvt.s32.f32 %v256
  %v289 = vcvt.s32.f32 %v257
  %v290 = vcvt.s32.f32 %v258
  %v291 = vcvt.s32.f32 %v259
  %v292 = vcvt.s32.f32 %v260
  %v293 = vcvt.s32.f32 %v261
  %v294 = vcvt.s32.f32 %v262
  %v295 = vcvt.s32.f32 %v263
  %v296 = vcvt.s32.f32 %v264
  %v297 = vcvt.s32.f32 %v265
  %v298 = vcvt.s32.f32 %v266
  %v299 = vcvt.s32.f32 %v267
  %v300 = vcvt.s32.f32 %v268
  %v301 = vcvt.s32.f32 %v269
  %v302 = vcvt.s32.f32 %v270
  %v303 = vcvt.s32.f32 %v271
  %v304 = vcvt.s32.f32 %v272
  %v305 = vcvt.s32.f32 %v273
  %v306 = vcvt.s32.f32 %v274
  %v307 = vcvt.s32.f32 %v275
  %v308 = vcvt.s32.f32 %v276
  %v309 = vcvt.s32.f32 %v277
  %v310 = vcvt.s32.f32 %v278
  %v311 = vcvt.s32.f32 %v279
  %v312 = vcvt.s32.f32 %v280
  %v313 = vcvt.s32.f32 %v281
  %v314 = vcvt.s32.f32 %v282
  %v315 = vcvt.s32.f32 %v283
  %v316 = vpack.c.bf16 %v285, %v284
  %v317 = vpack.c.bf16 %v287, %v286
  %v318 = vpack.c.bf16 %v289, %v288
  %v319 = vpack.c.bf16 %v291, %v290
  %v320 = vpack.c.bf16 %v293, %v292
  %v321 = vpack.c.bf16 %v295, %v294
  %v322 = vpack.c.bf16 %v297, %v296
  %v323 = vpack.c.bf16 %v299, %v298
  %v324 = vpack.c.bf16 %v301, %v300
  %v325 = vpack.c.bf16 %v303, %v302
  %v326 = vpack.c.bf16 %v305, %v304
  %v327 = vpack.c.bf16 %v307, %v306
  %v328 = vpack.c.bf16 %v309, %v308
  %v329 = vpack.c.bf16 %v311, %v310
  %v330 = vpack.c.bf16 %v313, %v312
  %v331 = vpack.c.bf16 %v315, %v314
  %v332 = vld [vmem:[#allocation2] sm:$0xff]
  %v333 = vld [vmem:[#allocation2 + $0x8] sm:$0xff]
  %v334 = vpack.c.bf16 %v74, %v72
  %v335 = vpack.c.bf16 %v88, %v86
  %336 = vmatpush.bf16.msra.mxu0 %v323
  %337 = vmatpush.bf16.msra.mxu0 %v322
  %338 = vmatpush.bf16.msra.mxu0 %v321
  %339 = vmatpush.bf16.msra.mxu0 %v320
  %340 = vmatpush.bf16.msra.mxu0 %v319
  %341 = vmatpush.bf16.msra.mxu0 %v318
  %342 = vmatpush.bf16.msra.mxu0 %v317
  %343 = vmatpush.bf16.msra.mxu0 %v316
  %344 = vmatmul.bf16.gmra.mxu0 %v334
  %v345 = vpop.f32.mrf.mxu0
  %v346 = vadd.f32 0.0, %v345
  %v347 = vpop.f32.mrf.mxu0
  %v348 = vadd.f32 0.0, %v347
  %349 = vdwg.mxu0
  %350 = vmatpush.bf16.msra.mxu0 %v331
  %351 = vmatpush.bf16.msra.mxu0 %v330
  %352 = vmatpush.bf16.msra.mxu0 %v329
  %353 = vmatpush.bf16.msra.mxu0 %v328
  %354 = vmatpush.bf16.msra.mxu0 %v327
  %355 = vmatpush.bf16.msra.mxu0 %v326
  %356 = vmatpush.bf16.msra.mxu0 %v325
  %357 = vmatpush.bf16.msra.mxu0 %v324
  %358 = vmatmul.bf16.gmra.mxu0 %v335
  %v359 = vpop.f32.mrf.mxu0
  %v360 = vadd.f32 %v346, %v359
  %v361 = vpop.f32.mrf.mxu0
  %v362 = vadd.f32 %v348, %v361
  %363 = vdwg.mxu0
  %v364 = vadd.f32 %v332, %v360
  %v365 = vadd.f32 %v333, %v362
  %366 = vst [vmem:[#allocation2] sm:$0xff] %v364
  %367 = vst [vmem:[#allocation2 + $0x8] sm:$0xff] %v365
  // Predicated region
  $region26: #{tpu_custom_call.1} parent=0 // pred_check
    %p368 = pneg %p21
  $region27: #{tpu_custom_call.1} parent=0 // pred_check_branch
    %370 = sbr.rel (%p368) target = $region29
  $region28: #{tpu_custom_call.1} parent=0 // pred_region
    %v371 = vld [vmem:[%s4] sm:$0x1]
    %vm372 = vcmp.gt.f32.partialorder %v371, 0.0
    %v373 = vsel %vm372, 1, 0
    %v374 = vcvt.s32.f32 %v373
    %v375 = vmul.f32 %v374, %v371
    %v376 = vsub.f32 1.0, %v374
    %v377 = vadd.f32 %v375, %v376
    %v378 = vrcp.pop %v377
    %v379 = vmul.f32 %v377, %v378
    %v380 = vsub.f32 1.0, %v379
    %v381 = vmul.f32 %v378, %v380
    %v382 = vadd.f32 %v378, %v381
    %vm383 = vweird.f32 %v377
    %vm384 = vweird.f32 %v378
    %vm385 = vmor %vm383, %vm384
    %v386 = vsel %vm385, %v378, %v382
    %v387 = vand.u32 2147483647, %v377
    %vm388 = vcmp.eq.f32.partialorder %v387, 8.507059e+37
    %v389 = vand.u32 %v377, 2147483648
    %v390 = vor.u32 1.1754944e-38, %v389
    %v391 = vsel %vm388, %v390, %v386
    %v392 = vmul.f32 %v391, 20.0
    %v393 = vld [vmem:[#allocation2] sm:$0xff]
    %v394 = vld [vmem:[#allocation2 + $0x8] sm:$0xff]
    %v396 = vperm.slane %v392, 0
    %v398 = vmul.f32 %v393, %v396
    %v399 = vmul.f32 %v394, %v396
    %v400 = vmul.f32 %v398, 1.442695
    %v401 = vpow.pop %v400
    %v402 = vmul.f32 %v399, 1.442695
    %v403 = vpow.pop %v402
    %v405 = vperm.slane %v374, 0
    %v407 = vmul.f32 %v401, %v405
    %v408 = vmul.f32 %v403, %v405
    %409 = vadd.xlane.f32.xlu0 %v407
    %v410 = vpop.xlane.xlu0 %409
    %411 = vadd.xlane.f32.xlu0 %v408
    %v412 = vpop.xlane.xlu0 %411
    %v413 = vadd.f32 %v410, 1e-06
    %v414 = vadd.f32 %v412, 1e-06
    %v415 = vrcp.pop %v413
    %v416 = vmul.f32 %v413, %v415
    %v417 = vsub.f32 1.0, %v416
    %v418 = vmul.f32 %v415, %v417
    %v419 = vadd.f32 %v415, %v418
    %vm420 = vweird.f32 %v413
    %vm421 = vweird.f32 %v415
    %vm422 = vmor %vm420, %vm421
    %v423 = vsel %vm422, %v415, %v419
    %v424 = vand.u32 2147483647, %v413
    %vm425 = vcmp.eq.f32.partialorder %v424, 8.507059e+37
    %v426 = vand.u32 %v413, 2147483648
    %v427 = vor.u32 1.1754944e-38, %v426
    %v428 = vsel %vm425, %v427, %v423
    %v429 = vrcp.pop %v414
    %v430 = vmul.f32 %v414, %v429
    %v431 = vsub.f32 1.0, %v430
    %v432 = vmul.f32 %v429, %v431
    %v433 = vadd.f32 %v429, %v432
    %vm434 = vweird.f32 %v414
    %vm435 = vweird.f32 %v429
    %vm436 = vmor %vm434, %vm435
    %v437 = vsel %vm436, %v429, %v433
    %v438 = vand.u32 2147483647, %v414
    %vm439 = vcmp.eq.f32.partialorder %v438, 8.507059e+37
    %v440 = vand.u32 %v414, 2147483648
    %v441 = vor.u32 1.1754944e-38, %v440
    %v442 = vsel %vm439, %v441, %v437
    %v443 = vmul.f32 %v407, %v428
    %v444 = vmul.f32 %v408, %v442
    %v445 = vadd.f32 %v443, 1e-06
    %v446 = vadd.f32 %v444, 1e-06
    %v447 = vlog2.pop %v445
    %v448 = vmul.f32 %v447, 0.6931472
    %v449 = vlog2.pop %v446
    %v450 = vmul.f32 %v449, 0.6931472
    %v451 = vld [vmem:[%s3] sm:$0xff]
    %v452 = vld [vmem:[%s3 + $0x8] sm:$0xff]
    %453 = vset.pattern.permute.xlu0 0
    %454 = vperm.xlu0 %453, %v451
    %v455 = vpop.permute.xlu0 %454
    %456 = vset.pattern.permute.xlu0 0
    %457 = vperm.xlu0 %456, %v452
    %v458 = vpop.permute.xlu0 %457
    %vm459 = vcmp.eq.s32.totalorder %v455, %v91
    %vm460 = vcmp.eq.s32.totalorder %v458, %v91
    %v461 = vsel %vm459, 1, 0
    %v462 = vsel %vm460, 1, 0
    %v463 = vcvt.s32.f32 %v461
    %v464 = vcvt.s32.f32 %v462
    %v465 = vmul.f32 %v448, %v463
    %v466 = vmul.f32 %v450, %v464
    %467 = vadd.xlane.f32.xlu0 %v465
    %v468 = vpop.xlane.xlu0 %467
    %469 = vadd.xlane.f32.xlu0 %v466
    %v470 = vpop.xlane.xlu0 %469
    %v471 = vsub.f32 0.0, %v468
    %v472 = vsub.f32 0.0, %v470
    %vm473 = vcmask 7168
    %474 = vst.msk [vmem:[%s5] sm:$0xff] %vm473, %v471
    %475 = vst.msk [vmem:[%s5 + $0x8] sm:$0xff] %vm473, %v472
  $region29: #{tpu_custom_call.1} parent=0 // pred_fallthru
    _
  // Predicated region
  $region30: #{tpu_custom_call.1} parent=0 // pred_check
    _
  $region31: #{tpu_custom_call.1} parent=0 // pred_check_branch
    %477 = sbr.rel (0) target = $region33
  $region32: #{tpu_custom_call.1} parent=0 // pred_region
    _
  $region33: #{tpu_custom_call.1} parent=0 // pred_fallthru
    _
  // Predicated region
  $region34: #{tpu_custom_call.1} parent=0 // pred_check
    _
  $region35: #{tpu_custom_call.1} parent=0 // pred_check_branch
    %479 = sbr.rel (0) target = $region37
  $region36: #{tpu_custom_call.1} parent=0 // pred_region
    _
  $region37: #{tpu_custom_call.1} parent=0 // pred_fallthru
    _

</llo_original>
